<compile_context>
chip_gen: v5e
topology: v5e:2x2
jax: 0.10.0
libtpu: 0.0.40
codegen_flags: <defaults>
</compile_context>

<pallas_src>
import jax
import jax.numpy as jnp
import numpy as np
from jax.experimental import pallas as pl
from jax.experimental.pallas import tpu as pltpu


def _round_up(a, m):
    return (a + m - 1) // m * m


def _cdiv(a, b):
    return -(-a // b)


def _deconv_bn_kernel(w_ref, p_ref, db_ref, sc_ref, bi_ref, o_ref):
    """One (batch, N-tile) output block. Single MXU GEMM + fused epilogue."""
    # (Mp, Kp) bf16 @ (Kp, Nblk) bf16 -> f32 accumulation on the MXU.
    acc = jnp.dot(w_ref[...], p_ref[...], preferred_element_type=jnp.float32)
    y = jnp.maximum(acc + db_ref[...], 0.0)          # ConvTranspose2d bias + ReLU
    o_ref[...] = y * sc_ref[...] + bi_ref[...]       # BatchNorm (folded affine)


def deconv_block_forward(x, weight, deconv_bias, gamma, beta,
                         running_mean, running_var, *, stride, eps=1e-5,
                         n_block_max=2048):
    """DeConvBlock forward.

    x            : (B, Cin, H, W)        float32
    weight       : (Cin, Cout, k, k)     float32  (PyTorch ConvTranspose2d layout)
    deconv_bias  : (Cout,)
    gamma, beta, running_mean, running_var : (Cout,)   BatchNorm2d parameters
    returns      : (B, Cout, Ho, Wo)     float32
    """
    x = x.astype(jnp.float32)
    weight = weight.astype(jnp.float32)

    B, Cin, H, W = x.shape
    Cin_w, Cout, k, k2 = weight.shape
    assert Cin_w == Cin and k == k2
    s = int(stride)
    p = (k - 1) // 2                      # get_padding(kernel_size)
    pad_eff = k - 1 - p
    Ho = (H - 1) * s - 2 * p + k
    Wo = (W - 1) * s - 2 * p + k

    # --- glue: sub-pixel (phase) geometry ----------------------------------
    # For output phase r = oh % s the contributing kernel taps are
    # kh = off[r] + t*s  (t = 0..n[r]-1), reading input rows ih = q + base[r] + t,
    # where oh = q*s + r.  (Same geometry for h and w.)
    offs, bases, ntaps = [], [], []
    for r in range(s):
        off = (pad_eff - r) % s
        base = -((pad_eff - r) // s)
        n = (k - 1 - off) // s + 1 if off <= k - 1 else 0
        offs.append(off); bases.append(base); ntaps.append(n)
    live = [r for r in range(s) if ntaps[r] > 0]
    bmin = min(bases[r] for r in live)
    kk = max(bases[r] + ntaps[r] for r in live) - bmin   # unified window size

    Qh, Qw = _cdiv(Ho, s), _cdiv(Wo, s)   # per-phase output grid (common, padded)

    # --- glue: pad x so every window read is in range ------------------------
    L = max(0, -bmin)
    Rh = max(0, (Qh - 1) + bmin + kk - 1 - (H - 1))
    Rw = max(0, (Qw - 1) + bmin + kk - 1 - (W - 1))
    xpad = jnp.pad(x, ((0, 0), (0, 0), (L, Rh), (L, Rw)))
    s0 = bmin + L                         # window start (padded coords) at q=0, j=0

    # --- glue: compact im2col on the UN-dilated input (no structural zeros) --
    cols = []
    for jh in range(kk):
        for jw in range(kk):
            cols.append(xpad[:, :, s0 + jh:s0 + jh + Qh, s0 + jw:s0 + jw + Qw])
    # K index = ci*kk*kk + jh*kk + jw ;  N index = qh*Qw + qw
    P = jnp.stack(cols, axis=2).reshape(B, Cin * kk * kk, Qh * Qw)

    # --- glue: phase-stacked weight matrix  (M = s*s*Cout rows) --------------
    # Wf[co, ci, kh, kw] = weight[ci, co, k-1-kh, k-1-kw]
    Wf = jnp.transpose(weight, (1, 0, 2, 3))[:, :, ::-1, ::-1]
    Wsub = jnp.zeros((s, s, Cout, Cin, kk, kk), jnp.float32)
    for rh in range(s):
        for th in range(ntaps[rh]):
            jh = bases[rh] - bmin + th
            kh = offs[rh] + th * s
            for rw in range(s):
                for tw in range(ntaps[rw]):
                    jw = bases[rw] - bmin + tw
                    kw = offs[rw] + tw * s
                    Wsub = Wsub.at[rh, rw, :, :, jh, jw].set(Wf[:, :, kh, kw])
    M = s * s * Cout
    K = Cin * kk * kk
    Wmat = Wsub.reshape(M, K)

    # --- glue: fold BatchNorm (inference form) + per-row epilogue vectors ----
    scale = (gamma / jnp.sqrt(running_var + eps)).astype(jnp.float32)
    bias = (beta - running_mean * scale).astype(jnp.float32)
    db_rows = jnp.tile(deconv_bias.astype(jnp.float32), s * s)   # row=(phase)*Cout+co
    sc_rows = jnp.tile(scale, s * s)
    bi_rows = jnp.tile(bias, s * s)

    # --- glue: alignment / balanced lane-dense N tiling under a VMEM budget --
    N = Qh * Qw
    Mp = _round_up(M, 16)                 # bf16 sublane for W rows (and /8 f32 out)
    Kp = _round_up(K, 16)                 # bf16 sublane for P rows

    # keep (P bf16 + out f32) per buffer under ~8 MiB; double-buffered + resident
    # W stays well inside the 48 MiB scoped VMEM limit on every generation.
    bytes_per_col = 2 * Kp + 4 * Mp
    n_cap = max(128, min(n_block_max,
                         (8 * 1024 * 1024 // bytes_per_col) // 128 * 128))
    n_tiles = _cdiv(N, n_cap)
    Nblk = _round_up(_cdiv(N, n_tiles), 128)
    n_tiles = _cdiv(N, Nblk)
    Np = Nblk * n_tiles

    W_pad = jnp.pad(Wmat, ((0, Mp - M), (0, Kp - K))).astype(jnp.bfloat16)
    P_pad = jnp.pad(P, ((0, 0), (0, Kp - K), (0, Np - N))).astype(jnp.bfloat16)
    db_pad = jnp.pad(db_rows, (0, Mp - M)).reshape(Mp, 1)
    sc_pad = jnp.pad(sc_rows, (0, Mp - M)).reshape(Mp, 1)
    bi_pad = jnp.pad(bi_rows, (0, Mp - M)).reshape(Mp, 1)

    grid = (B, n_tiles)

    out = pl.pallas_call(
        _deconv_bn_kernel,
        out_shape=jax.ShapeDtypeStruct((B, Mp, Np), jnp.float32),
        grid_spec=pltpu.PrefetchScalarGridSpec(
            num_scalar_prefetch=0,
            grid=grid,
            in_specs=[
                # W: full block, constant index -> VMEM-resident, fetched once.
                pl.BlockSpec((Mp, Kp), lambda b, n: (0, 0)),
                # P: squeezed batch dim, lane-dense (Kp, Nblk) bf16 tiles.
                pl.BlockSpec((None, Kp, Nblk), lambda b, n: (b, 0, n)),
                pl.BlockSpec((Mp, 1), lambda b, n: (0, 0)),
                pl.BlockSpec((Mp, 1), lambda b, n: (0, 0)),
                pl.BlockSpec((Mp, 1), lambda b, n: (0, 0)),
            ],
            out_specs=pl.BlockSpec((None, Mp, Nblk), lambda b, n: (b, 0, n)),
        ),
        compiler_params=pltpu.CompilerParams(
            dimension_semantics=("parallel", "parallel"),
            vmem_limit_bytes=48 * 1024 * 1024),
    )(W_pad, P_pad, db_pad, sc_pad, bi_pad)

    # --- glue: pixel-shuffle the phase rows back into (B, Cout, Ho, Wo) ------
    y = out[:, :M, :N].reshape(B, s, s, Cout, Qh, Qw)
    y = jnp.transpose(y, (0, 3, 4, 1, 5, 2)).reshape(B, Cout, Qh * s, Qw * s)
    return y[:, :, :Ho, :Wo]


# --- pure-JAX reference (mirrors the PyTorch forward) for verification ------
def _deconv_block_reference(x, weight, deconv_bias, gamma, beta,
                            running_mean, running_var, *, stride, eps=1e-5):
    Cin, Cout, k, _ = weight.shape
    p = (k - 1) // 2
    w_conv = jnp.transpose(weight, (1, 0, 2, 3))[:, :, ::-1, ::-1]
    y = jax.lax.conv_general_dilated(
        x, w_conv,
        window_strides=(1, 1),
        padding=[(k - 1 - p, k - 1 - p), (k - 1 - p, k - 1 - p)],
        lhs_dilation=(stride, stride),
        rhs_dilation=(1, 1),
        dimension_numbers=("NCHW", "OIHW", "NCHW"),
        precision=jax.lax.Precision.HIGHEST)
    y = y + deconv_bias[None, :, None, None]
    y = jnp.maximum(y, 0.0)
    scale = gamma / jnp.sqrt(running_var + eps)
    bias = beta - running_mean * scale
    return y * scale[None, :, None, None] + bias[None, :, None, None]


if __name__ == "__main__":
    key = jax.random.PRNGKey(0)
    k1, k2, k3, k4, k5, k6, k7 = jax.random.split(key, 7)

    B, Cin, H, W = 2, 4, 16, 16
    Cout, ksize, stride = 8, 3, 2

    x = jax.random.normal(k1, (B, Cin, H, W), dtype=jnp.float32)
    weight = jax.random.normal(k2, (Cin, Cout, ksize, ksize),
                               dtype=jnp.float32) * 0.1
    deconv_bias = jax.random.normal(k3, (Cout,), dtype=jnp.float32) * 0.1
    gamma = jax.random.uniform(k4, (Cout,), jnp.float32, 0.5, 1.5)
    beta = jax.random.normal(k5, (Cout,), dtype=jnp.float32) * 0.1
    running_mean = jax.random.normal(k6, (Cout,), dtype=jnp.float32) * 0.1
    running_var = jax.random.uniform(k7, (Cout,), jnp.float32, 0.5, 1.5)

    out = deconv_block_forward(x, weight, deconv_bias, gamma, beta,
                               running_mean, running_var, stride=stride)
    out = jax.block_until_ready(out)

    Ho = (H - 1) * stride - 2 * ((ksize - 1) // 2) + ksize
    assert out.shape == (B, Cout, Ho, Ho), out.shape

    ref = jax.block_until_ready(
        _deconv_block_reference(x, weight, deconv_bias, gamma, beta,
                                running_mean, running_var, stride=stride))
    # bf16 GEMM operands with f32 accumulation: use a bf16-appropriate tolerance.
    np.testing.assert_allclose(np.asarray(out), np.asarray(ref),
                               rtol=2e-2, atol=2e-2)
    print("KERNEL_OK")
</pallas_src>

<mosaic_0001>
module attributes {stable_mosaic.version = 11 : i64} {
  func.func @_deconv_bn_kernel(%arg0: i32, %arg1: i32, %arg2: memref<32x16xbf16, #tpu.memory_space<vmem>>, %arg3: memref<1x16x256xbf16, #tpu.memory_space<vmem>>, %arg4: memref<32x1xf32, #tpu.memory_space<vmem>>, %arg5: memref<32x1xf32, #tpu.memory_space<vmem>>, %arg6: memref<32x1xf32, #tpu.memory_space<vmem>>, %arg7: memref<1x32x256xf32, #tpu.memory_space<vmem>>) attributes {dimension_semantics = [#tpu.dimension_semantics<parallel>, #tpu.dimension_semantics<parallel>], iteration_bounds = array<i64: 2, 1>, scalar_prefetch = 0 : i64, scratch_operands = 0 : i64, tpu.core_type = #tpu.core_type<tc>, window_params = [{pipeline_mode = #tpu.pipeline_mode<synchronous>, transform_indices = @transform_0, window_bounds = array<i64: 32, 16>}, {transform_indices = @transform_1, window_bounds = array<i64: 1, 16, 256>}, {pipeline_mode = #tpu.pipeline_mode<synchronous>, transform_indices = @transform_2, window_bounds = array<i64: 32, 1>}, {pipeline_mode = #tpu.pipeline_mode<synchronous>, transform_indices = @transform_3, window_bounds = array<i64: 32, 1>}, {pipeline_mode = #tpu.pipeline_mode<synchronous>, transform_indices = @transform_4, window_bounds = array<i64: 32, 1>}, {transform_indices = @transform_5, window_bounds = array<i64: 1, 32, 256>}]} {
    %c0 = arith.constant 0 : index
    %c0_0 = arith.constant 0 : index
    %0 = vector.load %arg2[%c0, %c0_0] : memref<32x16xbf16, #tpu.memory_space<vmem>>, vector<32x16xbf16>
    %c0_1 = arith.constant 0 : index
    %c0_2 = arith.constant 0 : index
    %c0_3 = arith.constant 0 : index
    %1 = vector.load %arg3[%c0_1, %c0_2, %c0_3] : memref<1x16x256xbf16, #tpu.memory_space<vmem>>, vector<1x16x256xbf16>
    %2 = vector.shape_cast %1 : vector<1x16x256xbf16> to vector<16x256xbf16>
    %cst = arith.constant dense<0.000000e+00> : vector<32x256xf32>
    %3 = tpu.matmul %0, %2, %cst {dimension_numbers = #tpu.dot_dimension_numbers<[1], [0], [0], [1], [0, 0, 1, 1], [], []>} : vector<32x16xbf16>, vector<16x256xbf16>, vector<32x256xf32> -> vector<32x256xf32>
    %c0_4 = arith.constant 0 : index
    %c0_5 = arith.constant 0 : index
    %4 = vector.load %arg4[%c0_4, %c0_5] : memref<32x1xf32, #tpu.memory_space<vmem>>, vector<32x1xf32>
    %5 = vector.broadcast %4 : vector<32x1xf32> to vector<32x256xf32>
    %6 = arith.addf %3, %5 : vector<32x256xf32>
    %cst_6 = arith.constant 0.000000e+00 : f32
    %7 = vector.broadcast %cst_6 : f32 to vector<32x256xf32>
    %8 = arith.maximumf %6, %7 : vector<32x256xf32>
    %c0_7 = arith.constant 0 : index
    %c0_8 = arith.constant 0 : index
    %9 = vector.load %arg5[%c0_7, %c0_8] : memref<32x1xf32, #tpu.memory_space<vmem>>, vector<32x1xf32>
    %10 = vector.broadcast %9 : vector<32x1xf32> to vector<32x256xf32>
    %11 = arith.mulf %8, %10 : vector<32x256xf32>
    %c0_9 = arith.constant 0 : index
    %c0_10 = arith.constant 0 : index
    %12 = vector.load %arg6[%c0_9, %c0_10] : memref<32x1xf32, #tpu.memory_space<vmem>>, vector<32x1xf32>
    %13 = vector.broadcast %12 : vector<32x1xf32> to vector<32x256xf32>
    %14 = arith.addf %11, %13 : vector<32x256xf32>
    %c0_11 = arith.constant 0 : index
    %c0_12 = arith.constant 0 : index
    %c0_13 = arith.constant 0 : index
    %15 = vector.load %arg7[%c0_11, %c0_12, %c0_13] : memref<1x32x256xf32, #tpu.memory_space<vmem>>, vector<1x32x256xf32>
    %16 = vector.shape_cast %15 : vector<1x32x256xf32> to vector<32x256xf32>
    %17 = vector.shape_cast %14 : vector<32x256xf32> to vector<1x32x256xf32>
    tpu.vector_store %arg7[%c0_11, %c0_12, %c0_13], %17 {strides = array<i32>} : memref<1x32x256xf32, #tpu.memory_space<vmem>>, vector<1x32x256xf32>,
    return
  }
  func.func @transform_0(%arg0: i32, %arg1: i32) -> (i32, i32) {
    %c0_i32 = arith.constant 0 : i32
    %c0_i32_0 = arith.constant 0 : i32
    %c0_i32_1 = arith.constant 0 : i32
    return %c0_i32, %c0_i32_0 : i32, i32
  }
  func.func @transform_1(%arg0: i32, %arg1: i32) -> (i32, i32, i32) {
    %c0_i32 = arith.constant 0 : i32
    %c0_i32_0 = arith.constant 0 : i32
    return %arg0, %c0_i32, %arg1 : i32, i32, i32
  }
  func.func @transform_2(%arg0: i32, %arg1: i32) -> (i32, i32) {
    %c0_i32 = arith.constant 0 : i32
    %c0_i32_0 = arith.constant 0 : i32
    %c0_i32_1 = arith.constant 0 : i32
    return %c0_i32, %c0_i32_0 : i32, i32
  }
  func.func @transform_3(%arg0: i32, %arg1: i32) -> (i32, i32) {
    %c0_i32 = arith.constant 0 : i32
    %c0_i32_0 = arith.constant 0 : i32
    %c0_i32_1 = arith.constant 0 : i32
    return %c0_i32, %c0_i32_0 : i32, i32
  }
  func.func @transform_4(%arg0: i32, %arg1: i32) -> (i32, i32) {
    %c0_i32 = arith.constant 0 : i32
    %c0_i32_0 = arith.constant 0 : i32
    %c0_i32_1 = arith.constant 0 : i32
    return %c0_i32, %c0_i32_0 : i32, i32
  }
  func.func @transform_5(%arg0: i32, %arg1: i32) -> (i32, i32, i32) {
    %c0_i32 = arith.constant 0 : i32
    %c0_i32_0 = arith.constant 0 : i32
    return %arg0, %c0_i32, %arg1 : i32, i32, i32
  }
}

</mosaic_0001>

<llo_original>
// kernel: tpu_custom_call.1
$region0: #{tpu_custom_call.1}
  #allocation0 [shape = 'u32[]', space=smem, size = 0x4, offset = 0x4, fixed_abs, tag = 'smem constant byte address 0x4 - core index']
  #allocation1 [shape = 'u32[72,128]{1,0:T(1,128)}', space=vmem, size = 0x9000, scoped, tag = 'internal scratch']
  %s0 = inlined_call_operand.vmem [shape: bf16[32,16], index: 0, kind: input, shape index: {}]
  %s1 = inlined_call_operand.vmem [shape: bf16[2,16,256], index: 1, kind: input, shape index: {}]
  %s2 = inlined_call_operand.vmem [shape: f32[32,1], index: 2, kind: input, shape index: {}]
  %s3 = inlined_call_operand.vmem [shape: f32[32,1], index: 3, kind: input, shape index: {}]
  %s4 = inlined_call_operand.vmem [shape: f32[32,1], index: 4, kind: input, shape index: {}]
  %s5 = inlined_call_operand.hbm [shape: f32[2,32,256], index: 5, kind: output, shape index: {}]
  %s6 = sld [smem:[#allocation0]]
  $region53: #{tpu_custom_call.1} parent=0
    _
  %s8 = ssub.s32 1, %s6
  %s9 = scalar_select 0, %s8, %s6
  $region1: #{tpu_custom_call.1} parent=0
    #allocation2 [shape = 'u8[65536]{0}', space=vmem, size = 0x10000, scoped, tag = 'output window, operand 0']
    #allocation3 [shape = 's32[2]{0}', space=sflag, size = 0x8, scoped, tag = 'scoped memory for tpu_custom_call.1']
    %10 = vsyncpa [#allocation3], 0
    %s11 = scalar_lea.sflag [#allocation3], 1
    %12 = vsyncpa %s11, 0
    loop: start=0, step=1, limit=4
    $region2: #{tpu_custom_call.1} parent=1 // loop_pre_header
      _
    $region3: #{tpu_custom_call.1} parent=1 // loop_header
      %s14 = sphi 0, %s18
      %p15 = scmp.ge.s32.totalorder %s14, 4
      %s21 = sphi 0, %s33
      %s22 = sphi 0, %s29
      %s23 = sphi 0, %s21
      %s24 = sphi 0, %s22
      %s25 = sphi 0, %s23
      %s26 = sphi 0, %s24
      %s34 = sphi 0, %s34
      %s36 = sphi 0, %s34
      %s37 = sphi 0, %s36
      %s51 = sphi 0, %s37
      %s59 = sphi 0, %s61
      %s62 = sphi 0, %s59
      %s63 = sphi 0, %s62
      %s79 = sphi 0, %s63
      %s83 = sphi 0, %s83
      %s85 = sphi 0, %s83
      %s86 = sphi 0, %s85
      %s100 = sphi 0, %s86
      %s104 = sphi 0, %s104
      %s106 = sphi 0, %s104
      %s107 = sphi 0, %s106
      %s121 = sphi 0, %s107
      %s125 = sphi 0, %s125
      %s127 = sphi 0, %s125
      %s128 = sphi 0, %s127
      %s142 = sphi 0, %s128
      %s150 = sphi 0, %s152
      %s153 = sphi 0, %s150
      %s154 = sphi 0, %s153
      %s170 = sphi 0, %s154
    $region4: #{tpu_custom_call.1} parent=1 // loop_header_branch
      %17 = sbr.rel (%p15) target = $region8
    $region5: #{tpu_custom_call.1} parent=1 // loop_body
      %s19 = ssub.s32 %s14, 1
      %s20 = ssub.s32 %s14, 2
      %s27 = sadd.s32 1, %s22
      %p28 = scmp.ge.s32.totalorder %s27, 1
      %s29 = scalar_select %p28, 0, %s27
      %s30 = sadd.s32 1, %s21
      %s31 = scalar_select %p28, %s30, %s21
      %p32 = scmp.ge.s32.totalorder %s31, 2
      %s33 = scalar_select %p32, 0, %s31
      %s35 = sadd.s32 %s34, 1
      %p38 = scmp.eq.s32.totalorder %s14, 1
      %p39 = scmp.ne.s32.totalorder %s34, %s36
      %p40 = scmp.eq.s32.totalorder %s14, 0
      %p41 = por %p39, %p40
      %p42 = scmp.ne.s32.totalorder %s34, %s36
      %p43 = scmp.eq.s32.totalorder %s19, 1
      %p44 = por %p42, %p43
      %p45 = scmp.ne.s32.totalorder %s36, %s37
      %p46 = scmp.eq.s32.totalorder %s19, 0
      %p47 = por %p45, %p46
      %p48 = scmp.ne.s32.totalorder %s36, %s37
      %p49 = scmp.eq.s32.totalorder %s20, 1
      %p50 = por %p48, %p49
      %p52 = scmp.ne.s32.totalorder %s37, %s51
      %p53 = scmp.eq.s32.totalorder %s20, 0
      %p54 = por %p52, %p53
      %s55 = ssub.s32 %s21, %s33
      %s56 = ssub.s32 %s22, %s29
      %s57 = sor.u32 %s55, %s56
      %p58 = scmp.eq.s32.totalorder %s57, 0
      %s60 = sadd.s32 %s59, 1
      %s61 = scalar_select %p58, %s59, %s60
      %p64 = pneg %p58
      %p65 = scmp.eq.s32.totalorder %s14, 1
      %p66 = por %p64, %p65
      %p67 = scmp.ne.s32.totalorder %s59, %s62
      %p68 = scmp.eq.s32.totalorder %s14, 0
      %p69 = por %p67, %p68
      %p70 = scmp.ne.s32.totalorder %s59, %s62
      %p71 = scmp.eq.s32.totalorder %s19, 1
      %p72 = por %p70, %p71
      %p73 = scmp.ne.s32.totalorder %s62, %s63
      %p74 = scmp.eq.s32.totalorder %s19, 0
      %p75 = por %p73, %p74
      %p76 = scmp.ne.s32.totalorder %s62, %s63
      %p77 = scmp.eq.s32.totalorder %s20, 1
      %p78 = por %p76, %p77
      %p80 = scmp.ne.s32.totalorder %s63, %s79
      %p81 = scmp.eq.s32.totalorder %s20, 0
      %p82 = por %p80, %p81
      %s84 = sadd.s32 %s83, 1
      %p87 = scmp.eq.s32.totalorder %s14, 1
      %p88 = scmp.ne.s32.totalorder %s83, %s85
      %p89 = scmp.eq.s32.totalorder %s14, 0
      %p90 = por %p88, %p89
      %p91 = scmp.ne.s32.totalorder %s83, %s85
      %p92 = scmp.eq.s32.totalorder %s19, 1
      %p93 = por %p91, %p92
      %p94 = scmp.ne.s32.totalorder %s85, %s86
      %p95 = scmp.eq.s32.totalorder %s19, 0
      %p96 = por %p94, %p95
      %p97 = scmp.ne.s32.totalorder %s85, %s86
      %p98 = scmp.eq.s32.totalorder %s20, 1
      %p99 = por %p97, %p98
      %p101 = scmp.ne.s32.totalorder %s86, %s100
      %p102 = scmp.eq.s32.totalorder %s20, 0
      %p103 = por %p101, %p102
      %s105 = sadd.s32 %s104, 1
      %p108 = scmp.eq.s32.totalorder %s14, 1
      %p109 = scmp.ne.s32.totalorder %s104, %s106
      %p110 = scmp.eq.s32.totalorder %s14, 0
      %p111 = por %p109, %p110
      %p112 = scmp.ne.s32.totalorder %s104, %s106
      %p113 = scmp.eq.s32.totalorder %s19, 1
      %p114 = por %p112, %p113
      %p115 = scmp.ne.s32.totalorder %s106, %s107
      %p116 = scmp.eq.s32.totalorder %s19, 0
      %p117 = por %p115, %p116
      %p118 = scmp.ne.s32.totalorder %s106, %s107
      %p119 = scmp.eq.s32.totalorder %s20, 1
      %p120 = por %p118, %p119
      %p122 = scmp.ne.s32.totalorder %s107, %s121
      %p123 = scmp.eq.s32.totalorder %s20, 0
      %p124 = por %p122, %p123
      %s126 = sadd.s32 %s125, 1
      %p129 = scmp.eq.s32.totalorder %s14, 1
      %p130 = scmp.ne.s32.totalorder %s125, %s127
      %p131 = scmp.eq.s32.totalorder %s14, 0
      %p132 = por %p130, %p131
      %p133 = scmp.ne.s32.totalorder %s125, %s127
      %p134 = scmp.eq.s32.totalorder %s19, 1
      %p135 = por %p133, %p134
      %p136 = scmp.ne.s32.totalorder %s127, %s128
      %p137 = scmp.eq.s32.totalorder %s19, 0
      %p138 = por %p136, %p137
      %p139 = scmp.ne.s32.totalorder %s127, %s128
      %p140 = scmp.eq.s32.totalorder %s20, 1
      %p141 = por %p139, %p140
      %p143 = scmp.ne.s32.totalorder %s128, %s142
      %p144 = scmp.eq.s32.totalorder %s20, 0
      %p145 = por %p143, %p144
      %s146 = ssub.s32 %s21, %s33
      %s147 = ssub.s32 %s22, %s29
      %s148 = sor.u32 %s146, %s147
      %p149 = scmp.eq.s32.totalorder %s148, 0
      %s151 = sadd.s32 %s150, 1
      %s152 = scalar_select %p149, %s150, %s151
      %p155 = pneg %p149
      %p156 = scmp.eq.s32.totalorder %s14, 1
      %p157 = por %p155, %p156
      %p158 = scmp.ne.s32.totalorder %s150, %s153
      %p159 = scmp.eq.s32.totalorder %s14, 0
      %p160 = por %p158, %p159
      %p161 = scmp.ne.s32.totalorder %s150, %s153
      %p162 = scmp.eq.s32.totalorder %s19, 1
      %p163 = por %p161, %p162
      %p164 = scmp.ne.s32.totalorder %s153, %s154
      %p165 = scmp.eq.s32.totalorder %s19, 0
      %p166 = por %p164, %p165
      %p167 = scmp.ne.s32.totalorder %s153, %s154
      %p168 = scmp.eq.s32.totalorder %s20, 1
      %p169 = por %p167, %p168
      %p171 = scmp.ne.s32.totalorder %s154, %s170
      %p172 = scmp.eq.s32.totalorder %s20, 0
      %p173 = por %p171, %p172
      %p174 = scmp.le.s32.totalorder 1, %s14
      %p175 = scmp.lt.s32.totalorder %s14, 3
      %p176 = pnand %p174, %p175
      %p177 = pneg %p176
      // Predicated region
      $region9: #{tpu_custom_call.1} parent=5 // pred_check
        _
      $region10: #{tpu_custom_call.1} parent=5 // pred_check_branch
        %179 = sbr.rel (%p176) target = $region12
      $region11: #{tpu_custom_call.1} parent=5 // pred_region
        %s180 = ssub.s32 %s14, 1
        // Predicated region
        $region13: #{tpu_custom_call.1} parent=11 // pred_check
          %p181 = pneg %p47
        $region14: #{tpu_custom_call.1} parent=11 // pred_check_branch
          %183 = sbr.rel (%p181) target = $region16
        $region15: #{tpu_custom_call.1} parent=11 // pred_region
          _
        $region16: #{tpu_custom_call.1} parent=11 // pred_fallthru
          _
        // Predicated region
        $region17: #{tpu_custom_call.1} parent=11 // pred_check
          %p184 = pneg %p96
        $region18: #{tpu_custom_call.1} parent=11 // pred_check_branch
          %186 = sbr.rel (%p184) target = $region20
        $region19: #{tpu_custom_call.1} parent=11 // pred_region
          _
        $region20: #{tpu_custom_call.1} parent=11 // pred_fallthru
          _
        // Predicated region
        $region21: #{tpu_custom_call.1} parent=11 // pred_check
          %p187 = pneg %p117
        $region22: #{tpu_custom_call.1} parent=11 // pred_check_branch
          %189 = sbr.rel (%p187) target = $region24
        $region23: #{tpu_custom_call.1} parent=11 // pred_region
          _
        $region24: #{tpu_custom_call.1} parent=11 // pred_fallthru
          _
        // Predicated region
        $region25: #{tpu_custom_call.1} parent=11 // pred_check
          %p190 = pneg %p138
        $region26: #{tpu_custom_call.1} parent=11 // pred_check_branch
          %192 = sbr.rel (%p190) target = $region28
        $region27: #{tpu_custom_call.1} parent=11 // pred_region
          _
        $region28: #{tpu_custom_call.1} parent=11 // pred_fallthru
          _
      $region12: #{tpu_custom_call.1} parent=5 // pred_fallthru
        _
      %p193 = scmp.lt.s32.totalorder %s14, 2
      // Predicated region
      $region29: #{tpu_custom_call.1} parent=5 // pred_check
        %p194 = pneg %p193
      $region30: #{tpu_custom_call.1} parent=5 // pred_check_branch
        %196 = sbr.rel (%p194) target = $region32
      $region31: #{tpu_custom_call.1} parent=5 // pred_region
        // Predicated region
        $region33: #{tpu_custom_call.1} parent=31 // pred_check
          %p197 = pneg %p69
        $region34: #{tpu_custom_call.1} parent=31 // pred_check_branch
          %199 = sbr.rel (%p197) target = $region36
        $region35: #{tpu_custom_call.1} parent=31 // pred_region
          %s200 = smul.u32 2, %s22
          %p201 = scmp.lt.s32.totalorder %s21, 1
          %s202 = scalar_select %p201, %s21, 1
          %p203 = scmp.lt.s32.totalorder %s200, 1
          %s204 = scalar_select %p203, %s200, 1
          %s205 = smul.addr %s202, 4
          %s206 = sadd.s32 %s204, %s205
          %s207 = smul.addr %s206, 4
          %s208 = scalar_lea.vmem %s1, %s207
          %s209 = smul.u32 2, %s22
        $region36: #{tpu_custom_call.1} parent=31 // pred_fallthru
          _
      $region32: #{tpu_custom_call.1} parent=5 // pred_fallthru
        _
      %p210 = scmp.le.s32.totalorder 1, %s14
      %p211 = scmp.lt.s32.totalorder %s14, 3
      %p212 = pnand %p210, %p211
      %p213 = pneg %p212
      // Predicated region
      $region37: #{tpu_custom_call.1} parent=5 // pred_check
        _
      $region38: #{tpu_custom_call.1} parent=5 // pred_check_branch
        %215 = sbr.rel (%p212) target = $region40
      $region39: #{tpu_custom_call.1} parent=5 // pred_region
        %s216 = ssub.s32 %s14, 1
        %p217 = pneg %p47
        %p218 = pneg %p44
        %s219 = smul.u32 2, %s24
        %p220 = scmp.lt.s32.totalorder %s23, 1
        %s221 = scalar_select %p220, %s23, 1
        %p222 = scmp.lt.s32.totalorder %s219, 1
        %s223 = scalar_select %p222, %s219, 1
        %s224 = smul.addr %s221, 4
        %s225 = sadd.s32 %s223, %s224
        %s226 = smul.addr %s225, 4
        %s227 = scalar_lea.vmem %s1, %s226
        %p228 = pneg %p75
        %p229 = pneg %p72
        %p230 = pneg %p96
        %p231 = pneg %p93
        %p232 = pneg %p117
        %p233 = pneg %p114
        %p234 = pneg %p138
        %p235 = pneg %p135
        %p236 = pneg %p166
        %p237 = pneg %p163
        %s238 = sand.u32 %s153, 1
        %s239 = scalar_lea.sflag [#allocation3], %s238
        %s240 = sand.u32 %s153, 1
        %s241 = smul.addr %s240, 64
        %s242 = scalar_lea.vmem [#allocation2], %s241
        %s243 = smul.u32 2, %s24
        %p244 = scmp.lt.s32.totalorder %s23, 1
        %s245 = scalar_select %p244, %s23, 1
        %p246 = scmp.lt.s32.totalorder %s243, 1
        %s247 = scalar_select %p246, %s243, 1
        %s248 = smul.addr %s245, 4
        %s249 = sadd.s32 %s247, %s248
        %s250 = smul.addr %s249, 4
        %s251 = scalar_lea.vmem %s1, %s250
        %s252 = smul.u32 2, %s24
        %s253 = smul.u32 2, %s24
        %v255 = vld [vmem:[%s0] sm:$0xf]
        %v256 = vld [vmem:[%s0 + $0x4] sm:$0xf]
        %v257 = vld [vmem:[%s0 + $0x8] sm:$0xf]
        %v258 = vld [vmem:[%s0 + $0xc] sm:$0xf]
        %v259 = vld [vmem:[%s251] sm:$0xff]
        %v260 = vld [vmem:[%s251 + $0x8] sm:$0xff]
        %v261 = vld [vmem:[%s2] sm:$0xff]
        %v262 = vld [vmem:[%s2 + $0x8] sm:$0xff]
        %v263 = vld [vmem:[%s2 + $0x10] sm:$0xff]
        %v264 = vld [vmem:[%s2 + $0x18] sm:$0xff]
        %266 = vset.pattern.permute.xlu0 0
        %267 = vperm.xlu0 %266, %v261
        %v268 = vpop.permute.xlu0 %267
        %271 = vset.pattern.permute.xlu0 0
        %272 = vperm.xlu0 %271, %v262
        %v273 = vpop.permute.xlu0 %272
        %276 = vset.pattern.permute.xlu0 0
        %277 = vperm.xlu0 %276, %v263
        %v278 = vpop.permute.xlu0 %277
        %281 = vset.pattern.permute.xlu0 0
        %282 = vperm.xlu0 %281, %v264
        %v283 = vpop.permute.xlu0 %282
        %v289 = vunpack.c.l.b16 %v255
        %v290 = vunpack.c.l.b16 %v256
        %v291 = vunpack.c.l.b16 %v257
        %v292 = vunpack.c.l.b16 %v258
        %v293 = vpack.c.b16 %v290, %v289
        %v294 = vpack.c.b16 %v292, %v291
        %v297 = vunpack.c.l.b16 %v259
        %v298 = vunpack.c.h.b16 %v259
        %v299 = vunpack.c.l.b16 %v260
        %v300 = vunpack.c.h.b16 %v260
        %v301 = vpack.c.b16 %v299, %v297
        %v302 = vpack.c.b16 %v300, %v298
        %vm305 = vcmask 130048
        %v307 = vsel %vm305, %v293, 0
        %v310 = vsel %vm305, %v294, 0
        %312 = vmatpush.bf16.msra.mxu0 0
        %313 = vmatpush.bf16.msra.mxu0 0
        %314 = vmatpush.bf16.msra.mxu0 0
        %315 = vmatpush.bf16.msra.mxu0 0
        %316 = vmatpush.bf16.msra.mxu0 0
        %317 = vmatpush.bf16.msra.mxu0 0
        %318 = vmatpush.bf16.msra.mxu0 0
        %319 = vmatpush.bf16.msra.mxu0 %v301
        %320 = vmatmul.bf16.gmra.mxu0 %v307
        %v321 = vpop.f32.mrf.mxu0
        %v322 = vadd.f32 %v268, %v321
        %v323 = vpop.f32.mrf.mxu0
        %v324 = vadd.f32 %v273, %v323
        %325 = vmatmul.bf16.gmra.mxu0 %v310
        %v326 = vpop.f32.mrf.mxu0
        %v327 = vadd.f32 %v278, %v326
        %v328 = vpop.f32.mrf.mxu0
        %v329 = vadd.f32 %v283, %v328
        %330 = vdwg.mxu0
        %331 = vmatpush.bf16.msra.mxu0 0
        %332 = vmatpush.bf16.msra.mxu0 0
        %333 = vmatpush.bf16.msra.mxu0 0
        %334 = vmatpush.bf16.msra.mxu0 0
        %335 = vmatpush.bf16.msra.mxu0 0
        %336 = vmatpush.bf16.msra.mxu0 0
        %337 = vmatpush.bf16.msra.mxu0 0
        %338 = vmatpush.bf16.msra.mxu0 %v302
        %339 = vmatmul.bf16.gmra.mxu0 %v307
        %v340 = vpop.f32.mrf.mxu0
        %v341 = vadd.f32 %v268, %v340
        %v342 = vpop.f32.mrf.mxu0
        %v343 = vadd.f32 %v273, %v342
        %344 = vmatmul.bf16.gmra.mxu0 %v310
        %v345 = vpop.f32.mrf.mxu0
        %v346 = vadd.f32 %v278, %v345
        %v347 = vpop.f32.mrf.mxu0
        %v348 = vadd.f32 %v283, %v347
        %349 = vdwg.mxu0
        %v350 = vmax.f32 %v322, 0.0
        %v351 = vmax.f32 %v341, 0.0
        %v352 = vmax.f32 %v324, 0.0
        %v353 = vmax.f32 %v343, 0.0
        %v354 = vmax.f32 %v327, 0.0
        %v355 = vmax.f32 %v346, 0.0
        %v356 = vmax.f32 %v329, 0.0
        %v357 = vmax.f32 %v348, 0.0
        %v358 = vld [vmem:[%s3] sm:$0xff]
        %v359 = vld [vmem:[%s3 + $0x8] sm:$0xff]
        %v360 = vld [vmem:[%s3 + $0x10] sm:$0xff]
        %v361 = vld [vmem:[%s3 + $0x18] sm:$0xff]
        %363 = vset.pattern.permute.xlu0 0
        %364 = vperm.xlu0 %363, %v358
        %v365 = vpop.permute.xlu0 %364
        %368 = vset.pattern.permute.xlu0 0
        %369 = vperm.xlu0 %368, %v359
        %v370 = vpop.permute.xlu0 %369
        %373 = vset.pattern.permute.xlu0 0
        %374 = vperm.xlu0 %373, %v360
        %v375 = vpop.permute.xlu0 %374
        %378 = vset.pattern.permute.xlu0 0
        %379 = vperm.xlu0 %378, %v361
        %v380 = vpop.permute.xlu0 %379
        %v382 = vmul.f32 %v350, %v365
        %v383 = vmul.f32 %v351, %v365
        %v384 = vmul.f32 %v352, %v370
        %v385 = vmul.f32 %v353, %v370
        %v386 = vmul.f32 %v354, %v375
        %v387 = vmul.f32 %v355, %v375
        %v388 = vmul.f32 %v356, %v380
        %v389 = vmul.f32 %v357, %v380
        %v390 = vld [vmem:[%s4] sm:$0xff]
        %v391 = vld [vmem:[%s4 + $0x8] sm:$0xff]
        %v392 = vld [vmem:[%s4 + $0x10] sm:$0xff]
        %v393 = vld [vmem:[%s4 + $0x18] sm:$0xff]
        %395 = vset.pattern.permute.xlu0 0
        %396 = vperm.xlu0 %395, %v390
        %v397 = vpop.permute.xlu0 %396
        %400 = vset.pattern.permute.xlu0 0
        %401 = vperm.xlu0 %400, %v391
        %v402 = vpop.permute.xlu0 %401
        %405 = vset.pattern.permute.xlu0 0
        %406 = vperm.xlu0 %405, %v392
        %v407 = vpop.permute.xlu0 %406
        %410 = vset.pattern.permute.xlu0 0
        %411 = vperm.xlu0 %410, %v393
        %v412 = vpop.permute.xlu0 %411
        %v414 = vadd.f32 %v382, %v397
        %v415 = vadd.f32 %v383, %v397
        %v416 = vadd.f32 %v384, %v402
        %v417 = vadd.f32 %v385, %v402
        %v418 = vadd.f32 %v386, %v407
        %v419 = vadd.f32 %v387, %v407
        %v420 = vadd.f32 %v388, %v412
        %v421 = vadd.f32 %v389, %v412
        %422 = vst [vmem:[%s242] sm:$0xff] %v414
        %423 = vst [vmem:[%s242 + $0x8] sm:$0xff] %v415
        %424 = vst [vmem:[%s242 + $0x10] sm:$0xff] %v416
        %425 = vst [vmem:[%s242 + $0x18] sm:$0xff] %v417
        %426 = vst [vmem:[%s242 + $0x20] sm:$0xff] %v418
        %427 = vst [vmem:[%s242 + $0x28] sm:$0xff] %v419
        %428 = vst [vmem:[%s242 + $0x30] sm:$0xff] %v420
        %429 = vst [vmem:[%s242 + $0x38] sm:$0xff] %v421
        %s430 = sand.u32 %s153, 1
        %s431 = scalar_lea.sflag [#allocation3], %s430
        %s432 = sand.u32 %s153, 1
        %s433 = smul.addr %s432, 64
        %s434 = scalar_lea.vmem [#allocation2], %s433
        // Predicated region
        $region41: #{tpu_custom_call.1} parent=39 // pred_check
          %p435 = pneg %p163
        $region42: #{tpu_custom_call.1} parent=39 // pred_check_branch
          %437 = sbr.rel (%p435) target = $region44
        $region43: #{tpu_custom_call.1} parent=39 // pred_region
          %s438 = smul.u32 2, %s24
          %440 = vsyncadd %s431, 0
          %s441 = smul.addr %s23, 8
          %s442 = sadd.s32 %s438, %s441
          %s443 = smul.addr %s442, 8
          %s444 = scalar_lea.hbm %s5, %s443
          %s445 = sshll.u32 %s434, 4
          %s446 = int_to_ptr.vmem [resolvable:$true] %s445
          %s447 = sshll.u32 %s444, 4
          %s448 = int_to_ptr.hbm [resolvable:$true] %s447
          %453 = dma.vmem_to_hbm [thread:$0]  %s446, 1024, %s448, %s431, 256, 256, 16
        $region44: #{tpu_custom_call.1} parent=39 // pred_fallthru
          _
      $region40: #{tpu_custom_call.1} parent=5 // pred_fallthru
        _
      %p454 = scmp.le.s32.totalorder 2, %s14
      // Predicated region
      $region45: #{tpu_custom_call.1} parent=5 // pred_check
        %p455 = pneg %p454
      $region46: #{tpu_custom_call.1} parent=5 // pred_check_branch
        %457 = sbr.rel (%p455) target = $region48
      $region47: #{tpu_custom_call.1} parent=5 // pred_region
        %s458 = ssub.s32 %s14, 2
        // Predicated region
        $region49: #{tpu_custom_call.1} parent=47 // pred_check
          %p459 = pneg %p169
        $region50: #{tpu_custom_call.1} parent=47 // pred_check_branch
          %461 = sbr.rel (%p459) target = $region52
        $region51: #{tpu_custom_call.1} parent=47 // pred_region
          %s462 = sand.u32 %s154, 1
          %s463 = scalar_lea.sflag [#allocation3], %s462
          %s464 = sand.u32 %s154, 1
          %s465 = smul.addr %s464, 64
          %s466 = scalar_lea.vmem [#allocation2], %s465
          %468 = dma.done %s463, 1024
        $region52: #{tpu_custom_call.1} parent=47 // pred_fallthru
          _
      $region48: #{tpu_custom_call.1} parent=5 // pred_fallthru
        _
    $region6: #{tpu_custom_call.1} parent=1 // loop_footer
      %s18 = sadd.s32 1, %s14
    $region7: #{tpu_custom_call.1} parent=1 // loop_footer_branch
      %13 = sbr.rel target = $region3
    $region8: #{tpu_custom_call.1} parent=1 // loop_exit
      _
    %469 = vsyncpa [#allocation3], 1
    %s470 = scalar_lea.sflag [#allocation3], 1
    %471 = vsyncpa %s470, 1

</llo_original>
